<compile_context>
chip_gen: v7x
topology: tpu7x:2x2x1
jax: 0.10.0
libtpu: 0.0.40
codegen_flags: <defaults>
</compile_context>

<pallas_src>
import jax
import jax.numpy as jnp
from jax.experimental import pallas as pl
from jax.experimental.pallas import tpu as pltpu

# ---------------- configuration (small, deterministic) ----------------
B = 2            # batch
NUM_DEVICES = 2  # number of encoders / decoders
D_IN = 32        # per-device input feature dim
H = 32           # hidden dim of encoder / decoder MLPs
M = 16           # latent (transmitted symbols) dim
D_OUT = 32       # per-device decoder output dim
SIGMA = 0.1      # channel noise std
EPS = 1e-8

ND = NUM_DEVICES


# ---------------- Pallas kernel: whole forward, fused ----------------
def standard_net_kernel(x_ref, csi_ref, noise_ref,
                        w1e_ref, b1e_ref, w2e_ref, b2e_ref,
                        w1d_ref, b1d_ref, w2d_ref, b2d_ref,
                        out_ref):
    x = x_ref[...]          # [bt, ND*D_IN]  (lane-dense, device-major)
    csi = csi_ref[...]      # [bt, ND]
    noise = noise_ref[...]  # [bt, M]

    # ---- encoders: fused block-diagonal GEMMs over all ND devices ----
    h = jnp.dot(x, w1e_ref[...], preferred_element_type=jnp.float32) + b1e_ref[...]
    h = jnp.maximum(h, 0.0)                                             # [bt, ND*H]
    tx = jnp.dot(h, w2e_ref[...], preferred_element_type=jnp.float32) + b2e_ref[...]
    # tx: [bt, ND*M] — already a lane-dense slab, no jnp.stack needed.

    # ---- power constraint: unit average power per sample over (devices, M) ----
    power = jnp.mean(tx * tx, axis=-1, keepdims=True)                   # [bt, 1]
    tx = tx * jax.lax.rsqrt(power + EPS)

    # ---- MAC AWGN channel: y = sum_i csi_i * t_i + sigma * n ----
    y = SIGMA * noise
    for i in range(NUM_DEVICES):                                        # static slices
        y = y + csi[:, i:i + 1] * tx[:, i * M:(i + 1) * M]              # [bt, M]

    # ---- decoders: all ND decoders see the same (y, csi); csi weight folded in ----
    yc = jnp.concatenate([y, csi], axis=-1)                             # [bt, M+ND]
    hd = jnp.dot(yc, w1d_ref[...], preferred_element_type=jnp.float32) + b1d_ref[...]
    hd = jnp.maximum(hd, 0.0)                                           # [bt, ND*H]
    out_ref[...] = (jnp.dot(hd, w2d_ref[...], preferred_element_type=jnp.float32)
                    + b2d_ref[...])                                     # [bt, ND*D_OUT]


# ---------------- wrapper: batch grid, lane-dense I/O ----------------
def standard_net_forward(x, csi, noise, packed):
    w1e, b1e, w2e, b2e, w1d, b1d, w2d, b2d = packed
    batch = x.shape[0]
    x2d = x.reshape(batch, ND * D_IN)          # layout plumbing, free in the wrapper

    bt = batch if batch <= 128 else 128        # batch tile
    assert batch % bt == 0
    grid = (batch // bt,)

    bmap = lambda b: (b, 0)    # batch-tiled operands
    wmap = lambda b: (0, 0)    # weights: constant index -> resident, DMA'd once

    in_specs = [
        pl.BlockSpec((bt, ND * D_IN), bmap),
        pl.BlockSpec((bt, ND), bmap),
        pl.BlockSpec((bt, M), bmap),
        pl.BlockSpec(w1e.shape, wmap),
        pl.BlockSpec(b1e.shape, wmap),
        pl.BlockSpec(w2e.shape, wmap),
        pl.BlockSpec(b2e.shape, wmap),
        pl.BlockSpec(w1d.shape, wmap),
        pl.BlockSpec(b1d.shape, wmap),
        pl.BlockSpec(w2d.shape, wmap),
        pl.BlockSpec(b2d.shape, wmap),
    ]
    out_specs = pl.BlockSpec((bt, ND * D_OUT), bmap)

    out2d = pl.pallas_call(
        standard_net_kernel,
        out_shape=jax.ShapeDtypeStruct((batch, ND * D_OUT), jnp.float32),
        grid_spec=pltpu.PrefetchScalarGridSpec(
            num_scalar_prefetch=0, grid=grid,
            in_specs=in_specs, out_specs=out_specs),
        compiler_params=pltpu.CompilerParams(
            dimension_semantics=("parallel",)),   # both TCs on v7x
    )(x2d, csi, noise, w1e, b1e, w2e, b2e, w1d, b1d, w2d, b2d)
    return out2d.reshape(batch, ND, D_OUT)


# ---------------- deterministic parameter init + host-side prepacking ----------------
def init_params(key):
    ks = jax.random.split(key, 8)

    def lin(k, fan_in, shape):
        return jax.random.normal(k, shape, jnp.float32) / jnp.sqrt(fan_in)

    w1e = lin(ks[0], D_IN, (ND, D_IN, H))
    b1e = jnp.zeros((ND, H), jnp.float32)
    w2e = lin(ks[1], H, (ND, H, M))
    b2e = jnp.zeros((ND, M), jnp.float32)

    w1dy = lin(ks[2], M + ND, (ND, M, H))
    w1dc = lin(ks[3], M + ND, (ND, ND, H))
    b1d = jnp.zeros((ND, H), jnp.float32)
    w2d = lin(ks[4], H, (ND, H, D_OUT))
    b2d = jnp.zeros((ND, D_OUT), jnp.float32)

    return (w1e, b1e, w2e, b2e, w1dy, w1dc, b1d, w2d, b2d)


def _block_diag(ws):
    # ws: (ND, K, N) -> (ND*K, ND*N) block-diagonal
    nd, k, n = ws.shape
    out = jnp.zeros((nd * k, nd * n), ws.dtype)
    for i in range(nd):
        out = out.at[i * k:(i + 1) * k, i * n:(i + 1) * n].set(ws[i])
    return out


def pack_params(params):
    w1e, b1e, w2e, b2e, w1dy, w1dc, b1d, w2d, b2d = params
    W1E = _block_diag(w1e)                         # (ND*D_IN, ND*H) block-diag
    B1E = b1e.reshape(1, ND * H)
    W2E = _block_diag(w2e)                         # (ND*H, ND*M) block-diag
    B2E = b2e.reshape(1, ND * M)
    # decoder layer 1: same input for every decoder -> horizontal concat across
    # decoders; fold csi weight below the y weight (K = M + ND).
    W1D = jnp.concatenate(
        [jnp.concatenate([w1dy[i], w1dc[i]], axis=0) for i in range(ND)], axis=1)
    B1D = b1d.reshape(1, ND * H)                   # (M+ND, ND*H)
    W2D = _block_diag(w2d)                         # (ND*H, ND*D_OUT) block-diag
    B2D = b2d.reshape(1, ND * D_OUT)
    return (W1E, B1E, W2E, B2E, W1D, B1D, W2D, B2D)


# ---------------- pure-JAX reference (correctness check) ----------------
def reference_forward(x, csi, noise, params):
    w1e, b1e, w2e, b2e, w1dy, w1dc, b1d, w2d, b2d = params
    tx = []
    for i in range(ND):
        h = jnp.maximum(x[:, i, :] @ w1e[i] + b1e[i], 0.0)
        tx.append(h @ w2e[i] + b2e[i])
    tx = jnp.stack(tx, axis=1)
    power = jnp.mean(tx * tx, axis=(1, 2), keepdims=True)
    tx = tx / jnp.sqrt(power + EPS)
    y = jnp.sum(csi[:, :, None] * tx, axis=1) + SIGMA * noise
    outs = []
    for i in range(ND):
        h = jnp.maximum(y @ w1dy[i] + csi @ w1dc[i] + b1d[i], 0.0)
        outs.append(h @ w2d[i] + b2d[i])
    return jnp.stack(outs, axis=1)


if __name__ == "__main__":
    key = jax.random.PRNGKey(0)
    k_x, k_csi, k_noise, k_params = jax.random.split(key, 4)

    x = jax.random.normal(k_x, (B, ND, D_IN), jnp.float32)
    csi = 0.5 + jax.random.uniform(k_csi, (B, ND), jnp.float32)
    noise = jax.random.normal(k_noise, (B, M), jnp.float32)
    params = init_params(k_params)
    packed = pack_params(params)

    out = jax.jit(standard_net_forward)(x, csi, noise, packed)
    out = jax.block_until_ready(out)

    ref = reference_forward(x, csi, noise, params)
    assert out.shape == (B, ND, D_OUT)
    assert jnp.allclose(out, ref, atol=1e-4, rtol=1e-4)

    print("KERNEL_OK")
</pallas_src>

<mosaic_0001>
module attributes {stable_mosaic.version = 11 : i64} {
  func.func @standard_net_kernel(%arg0: i32, %arg1: memref<2x64xf32, #tpu.memory_space<vmem>>, %arg2: memref<2x2xf32, #tpu.memory_space<vmem>>, %arg3: memref<2x16xf32, #tpu.memory_space<vmem>>, %arg4: memref<64x64xf32, #tpu.memory_space<vmem>>, %arg5: memref<1x64xf32, #tpu.memory_space<vmem>>, %arg6: memref<64x32xf32, #tpu.memory_space<vmem>>, %arg7: memref<1x32xf32, #tpu.memory_space<vmem>>, %arg8: memref<18x64xf32, #tpu.memory_space<vmem>>, %arg9: memref<1x64xf32, #tpu.memory_space<vmem>>, %arg10: memref<64x64xf32, #tpu.memory_space<vmem>>, %arg11: memref<1x64xf32, #tpu.memory_space<vmem>>, %arg12: memref<2x64xf32, #tpu.memory_space<vmem>>) attributes {dimension_semantics = [#tpu.dimension_semantics<parallel>], iteration_bounds = array<i64: 1>, scalar_prefetch = 0 : i64, scratch_operands = 0 : i64, tpu.core_type = #tpu.core_type<tc>, window_params = [{transform_indices = @transform_0, window_bounds = array<i64: 2, 64>}, {transform_indices = @transform_1, window_bounds = array<i64: 2, 2>}, {transform_indices = @transform_2, window_bounds = array<i64: 2, 16>}, {pipeline_mode = #tpu.pipeline_mode<synchronous>, transform_indices = @transform_3, window_bounds = array<i64: 64, 64>}, {pipeline_mode = #tpu.pipeline_mode<synchronous>, transform_indices = @transform_4, window_bounds = array<i64: 1, 64>}, {pipeline_mode = #tpu.pipeline_mode<synchronous>, transform_indices = @transform_5, window_bounds = array<i64: 64, 32>}, {pipeline_mode = #tpu.pipeline_mode<synchronous>, transform_indices = @transform_6, window_bounds = array<i64: 1, 32>}, {pipeline_mode = #tpu.pipeline_mode<synchronous>, transform_indices = @transform_7, window_bounds = array<i64: 18, 64>}, {pipeline_mode = #tpu.pipeline_mode<synchronous>, transform_indices = @transform_8, window_bounds = array<i64: 1, 64>}, {pipeline_mode = #tpu.pipeline_mode<synchronous>, transform_indices = @transform_9, window_bounds = array<i64: 64, 64>}, {pipeline_mode = #tpu.pipeline_mode<synchronous>, transform_indices = @transform_10, window_bounds = array<i64: 1, 64>}, {transform_indices = @transform_11, window_bounds = array<i64: 2, 64>}]} {
    %c0 = arith.constant 0 : index
    %c0_0 = arith.constant 0 : index
    %0 = vector.load %arg1[%c0, %c0_0] : memref<2x64xf32, #tpu.memory_space<vmem>>, vector<2x64xf32>
    %c0_1 = arith.constant 0 : index
    %c0_2 = arith.constant 0 : index
    %1 = vector.load %arg2[%c0_1, %c0_2] : memref<2x2xf32, #tpu.memory_space<vmem>>, vector<2x2xf32>
    %c0_3 = arith.constant 0 : index
    %c0_4 = arith.constant 0 : index
    %2 = vector.load %arg3[%c0_3, %c0_4] : memref<2x16xf32, #tpu.memory_space<vmem>>, vector<2x16xf32>
    %c0_5 = arith.constant 0 : index
    %c0_6 = arith.constant 0 : index
    %3 = vector.load %arg4[%c0_5, %c0_6] : memref<64x64xf32, #tpu.memory_space<vmem>>, vector<64x64xf32>
    %cst = arith.constant dense<0.000000e+00> : vector<2x64xf32>
    %4 = tpu.matmul %0, %3, %cst {dimension_numbers = #tpu.dot_dimension_numbers<[1], [0], [0], [1], [0, 0, 1, 1], [], []>} : vector<2x64xf32>, vector<64x64xf32>, vector<2x64xf32> -> vector<2x64xf32>
    %c0_7 = arith.constant 0 : index
    %c0_8 = arith.constant 0 : index
    %5 = vector.load %arg5[%c0_7, %c0_8] : memref<1x64xf32, #tpu.memory_space<vmem>>, vector<1x64xf32>
    %6 = vector.broadcast %5 : vector<1x64xf32> to vector<2x64xf32>
    %7 = arith.addf %4, %6 : vector<2x64xf32>
    %cst_9 = arith.constant 0.000000e+00 : f32
    %8 = vector.broadcast %cst_9 : f32 to vector<2x64xf32>
    %9 = arith.maximumf %7, %8 : vector<2x64xf32>
    %c0_10 = arith.constant 0 : index
    %c0_11 = arith.constant 0 : index
    %10 = vector.load %arg6[%c0_10, %c0_11] : memref<64x32xf32, #tpu.memory_space<vmem>>, vector<64x32xf32>
    %cst_12 = arith.constant dense<0.000000e+00> : vector<2x32xf32>
    %11 = tpu.matmul %9, %10, %cst_12 {dimension_numbers = #tpu.dot_dimension_numbers<[1], [0], [0], [1], [0, 0, 1, 1], [], []>} : vector<2x64xf32>, vector<64x32xf32>, vector<2x32xf32> -> vector<2x32xf32>
    %c0_13 = arith.constant 0 : index
    %c0_14 = arith.constant 0 : index
    %12 = vector.load %arg7[%c0_13, %c0_14] : memref<1x32xf32, #tpu.memory_space<vmem>>, vector<1x32xf32>
    %13 = vector.broadcast %12 : vector<1x32xf32> to vector<2x32xf32>
    %14 = arith.addf %11, %13 : vector<2x32xf32>
    %15 = arith.mulf %14, %14 : vector<2x32xf32>
    %cst_15 = arith.constant dense<0.000000e+00> : vector<2xf32>
    %16 = vector.multi_reduction <add>, %15, %cst_15 [1] : vector<2x32xf32> to vector<2xf32>
    %17 = vector.shape_cast %16 : vector<2xf32> to vector<2x1xf32>
    %cst_16 = arith.constant 3.200000e+01 : f32
    %18 = vector.broadcast %cst_16 : f32 to vector<2x1xf32>
    %19 = arith.divf %17, %18 : vector<2x1xf32>
    %cst_17 = arith.constant 9.99999993E-9 : f32
    %20 = vector.broadcast %cst_17 : f32 to vector<2x1xf32>
    %21 = arith.addf %19, %20 : vector<2x1xf32>
    %22 = math.rsqrt %21 : vector<2x1xf32>
    %23 = vector.broadcast %22 : vector<2x1xf32> to vector<2x32xf32>
    %24 = arith.mulf %14, %23 : vector<2x32xf32>
    %cst_18 = arith.constant 1.000000e-01 : f32
    %25 = vector.broadcast %cst_18 : f32 to vector<2x16xf32>
    %26 = arith.mulf %25, %2 : vector<2x16xf32>
    %27 = vector.extract_strided_slice %1 {offsets = [0, 0], sizes = [2, 1], strides = [1, 1]} : vector<2x2xf32> to vector<2x1xf32>
    %28 = vector.extract_strided_slice %24 {offsets = [0, 0], sizes = [2, 16], strides = [1, 1]} : vector<2x32xf32> to vector<2x16xf32>
    %29 = vector.broadcast %27 : vector<2x1xf32> to vector<2x16xf32>
    %30 = arith.mulf %29, %28 : vector<2x16xf32>
    %31 = arith.addf %26, %30 : vector<2x16xf32>
    %32 = vector.extract_strided_slice %1 {offsets = [0, 1], sizes = [2, 1], strides = [1, 1]} : vector<2x2xf32> to vector<2x1xf32>
    %33 = vector.extract_strided_slice %24 {offsets = [0, 16], sizes = [2, 16], strides = [1, 1]} : vector<2x32xf32> to vector<2x16xf32>
    %34 = vector.broadcast %32 : vector<2x1xf32> to vector<2x16xf32>
    %35 = arith.mulf %34, %33 : vector<2x16xf32>
    %36 = arith.addf %31, %35 : vector<2x16xf32>
    %37 = tpu.concatenate %36, %1 in 1 : vector<2x16xf32>, vector<2x2xf32> -> vector<2x18xf32>
    %c0_19 = arith.constant 0 : index
    %c0_20 = arith.constant 0 : index
    %38 = vector.load %arg8[%c0_19, %c0_20] : memref<18x64xf32, #tpu.memory_space<vmem>>, vector<18x64xf32>
    %cst_21 = arith.constant dense<0.000000e+00> : vector<2x64xf32>
    %39 = tpu.matmul %37, %38, %cst_21 {dimension_numbers = #tpu.dot_dimension_numbers<[1], [0], [0], [1], [0, 0, 1, 1], [], []>} : vector<2x18xf32>, vector<18x64xf32>, vector<2x64xf32> -> vector<2x64xf32>
    %c0_22 = arith.constant 0 : index
    %c0_23 = arith.constant 0 : index
    %40 = vector.load %arg9[%c0_22, %c0_23] : memref<1x64xf32, #tpu.memory_space<vmem>>, vector<1x64xf32>
    %41 = vector.broadcast %40 : vector<1x64xf32> to vector<2x64xf32>
    %42 = arith.addf %39, %41 : vector<2x64xf32>
    %cst_24 = arith.constant 0.000000e+00 : f32
    %43 = vector.broadcast %cst_24 : f32 to vector<2x64xf32>
    %44 = arith.maximumf %42, %43 : vector<2x64xf32>
    %c0_25 = arith.constant 0 : index
    %c0_26 = arith.constant 0 : index
    %45 = vector.load %arg10[%c0_25, %c0_26] : memref<64x64xf32, #tpu.memory_space<vmem>>, vector<64x64xf32>
    %cst_27 = arith.constant dense<0.000000e+00> : vector<2x64xf32>
    %46 = tpu.matmul %44, %45, %cst_27 {dimension_numbers = #tpu.dot_dimension_numbers<[1], [0], [0], [1], [0, 0, 1, 1], [], []>} : vector<2x64xf32>, vector<64x64xf32>, vector<2x64xf32> -> vector<2x64xf32>
    %c0_28 = arith.constant 0 : index
    %c0_29 = arith.constant 0 : index
    %47 = vector.load %arg11[%c0_28, %c0_29] : memref<1x64xf32, #tpu.memory_space<vmem>>, vector<1x64xf32>
    %48 = vector.broadcast %47 : vector<1x64xf32> to vector<2x64xf32>
    %49 = arith.addf %46, %48 : vector<2x64xf32>
    %c0_30 = arith.constant 0 : index
    %c0_31 = arith.constant 0 : index
    %50 = vector.load %arg12[%c0_30, %c0_31] : memref<2x64xf32, #tpu.memory_space<vmem>>, vector<2x64xf32>
    tpu.vector_store %arg12[%c0_30, %c0_31], %49 {strides = array<i32>} : memref<2x64xf32, #tpu.memory_space<vmem>>, vector<2x64xf32>,
    return
  }
  func.func @transform_0(%arg0: i32) -> (i32, i32) {
    %c0_i32 = arith.constant 0 : i32
    %c0_i32_0 = arith.constant 0 : i32
    return %arg0, %c0_i32 : i32, i32
  }
  func.func @transform_1(%arg0: i32) -> (i32, i32) {
    %c0_i32 = arith.constant 0 : i32
    %c0_i32_0 = arith.constant 0 : i32
    return %arg0, %c0_i32 : i32, i32
  }
  func.func @transform_2(%arg0: i32) -> (i32, i32) {
    %c0_i32 = arith.constant 0 : i32
    %c0_i32_0 = arith.constant 0 : i32
    return %arg0, %c0_i32 : i32, i32
  }
  func.func @transform_3(%arg0: i32) -> (i32, i32) {
    %c0_i32 = arith.constant 0 : i32
    %c0_i32_0 = arith.constant 0 : i32
    %c0_i32_1 = arith.constant 0 : i32
    return %c0_i32, %c0_i32_0 : i32, i32
  }
  func.func @transform_4(%arg0: i32) -> (i32, i32) {
    %c0_i32 = arith.constant 0 : i32
    %c0_i32_0 = arith.constant 0 : i32
    %c0_i32_1 = arith.constant 0 : i32
    return %c0_i32, %c0_i32_0 : i32, i32
  }
  func.func @transform_5(%arg0: i32) -> (i32, i32) {
    %c0_i32 = arith.constant 0 : i32
    %c0_i32_0 = arith.constant 0 : i32
    %c0_i32_1 = arith.constant 0 : i32
    return %c0_i32, %c0_i32_0 : i32, i32
  }
  func.func @transform_6(%arg0: i32) -> (i32, i32) {
    %c0_i32 = arith.constant 0 : i32
    %c0_i32_0 = arith.constant 0 : i32
    %c0_i32_1 = arith.constant 0 : i32
    return %c0_i32, %c0_i32_0 : i32, i32
  }
  func.func @transform_7(%arg0: i32) -> (i32, i32) {
    %c0_i32 = arith.constant 0 : i32
    %c0_i32_0 = arith.constant 0 : i32
    %c0_i32_1 = arith.constant 0 : i32
    return %c0_i32, %c0_i32_0 : i32, i32
  }
  func.func @transform_8(%arg0: i32) -> (i32, i32) {
    %c0_i32 = arith.constant 0 : i32
    %c0_i32_0 = arith.constant 0 : i32
    %c0_i32_1 = arith.constant 0 : i32
    return %c0_i32, %c0_i32_0 : i32, i32
  }
  func.func @transform_9(%arg0: i32) -> (i32, i32) {
    %c0_i32 = arith.constant 0 : i32
    %c0_i32_0 = arith.constant 0 : i32
    %c0_i32_1 = arith.constant 0 : i32
    return %c0_i32, %c0_i32_0 : i32, i32
  }
  func.func @transform_10(%arg0: i32) -> (i32, i32) {
    %c0_i32 = arith.constant 0 : i32
    %c0_i32_0 = arith.constant 0 : i32
    %c0_i32_1 = arith.constant 0 : i32
    return %c0_i32, %c0_i32_0 : i32, i32
  }
  func.func @transform_11(%arg0: i32) -> (i32, i32) {
    %c0_i32 = arith.constant 0 : i32
    %c0_i32_0 = arith.constant 0 : i32
    return %arg0, %c0_i32 : i32, i32
  }
}

</mosaic_0001>

<llo_original>
// kernel: standard_net_forward.1
$region0: #{standard_net_forward.1}
  #allocation0 [shape = 'u32[]', space=smem, size = 0x4, offset = 0x4, fixed_abs, tag = 'smem constant byte address 0x4 - core index']
  #allocation1 [shape = 'u32[144,128]{1,0:T(1,128)}', space=vmem, size = 0x12000, scoped, tag = 'internal scratch']
  %s0 = inlined_call_operand.vmem [shape: f32[2,64], index: 0, kind: input, shape index: {}]
  %s1 = inlined_call_operand.hbm [shape: f32[2,2], index: 1, kind: input, shape index: {}]
  %s2 = inlined_call_operand.hbm [shape: f32[2,16], index: 2, kind: input, shape index: {}]
  %s3 = inlined_call_operand.vmem [shape: f32[64,64], index: 3, kind: input, shape index: {}]
  %s4 = inlined_call_operand.hbm [shape: f32[1,64], index: 4, kind: input, shape index: {}]
  %s5 = inlined_call_operand.vmem [shape: f32[64,32], index: 5, kind: input, shape index: {}]
  %s6 = inlined_call_operand.hbm [shape: f32[1,32], index: 6, kind: input, shape index: {}]
  %s7 = inlined_call_operand.hbm [shape: f32[18,64], index: 7, kind: input, shape index: {}]
  %s8 = inlined_call_operand.vmem [shape: f32[1,64], index: 8, kind: input, shape index: {}]
  %s9 = inlined_call_operand.vmem [shape: f32[64,64], index: 9, kind: input, shape index: {}]
  %s10 = inlined_call_operand.vmem [shape: f32[1,64], index: 10, kind: input, shape index: {}]
  %s11 = inlined_call_operand.vmem [shape: f32[2,64], index: 11, kind: output, shape index: {}]
  %s12 = sld [smem:[#allocation0]]
  $region74: #{standard_net_forward.1} parent=0
    _
  %s14 = ssub.s32 1, %s12
  %s15 = scalar_select 0, %s14, %s12
  $region1: #{standard_net_forward.1} parent=0
    #allocation2 [shape = 'u8[1024]{0}', space=vmem, size = 0x400, scoped, tag = 'input window, operand 1, single buffered']
    #allocation3 [shape = 's32[1]{0}', space=sflag, size = 0x4, scoped, tag = 'scoped memory for standard_net_forward.1']
    #allocation4 [shape = 'u8[1024]{0}', space=vmem, size = 0x400, scoped, tag = 'input window, operand 2, single buffered']
    #allocation5 [shape = 's32[1]{0}', space=sflag, size = 0x4, scoped, tag = 'scoped memory for standard_net_forward.1']
    #allocation6 [shape = 'u8[512]{0}', space=vmem, size = 0x400, scoped, tag = 'input window, operand 4, single buffered']
    #allocation7 [shape = 'u8[512]{0}', space=vmem, size = 0x400, scoped, tag = 'input window, operand 6, single buffered']
    #allocation8 [shape = 's32[1]{0}', space=sflag, size = 0x4, scoped, tag = 'scoped memory for standard_net_forward.1']
    #allocation9 [shape = 'u8[12288]{0}', space=vmem, size = 0x3000, scoped, tag = 'input window, operand 7, single buffered']
    %16 = vsyncpa [#allocation3], 0
    %17 = vsyncpa [#allocation5], 0
    %18 = vsyncpa [#allocation8], 0
    // Predicated region
    $region2: #{standard_net_forward.1} parent=1 // pred_check
      _
    $region3: #{standard_net_forward.1} parent=1 // pred_check_branch
      %20 = sbr.rel (0) target = $region5
    $region4: #{standard_net_forward.1} parent=1 // pred_region
      _
    $region5: #{standard_net_forward.1} parent=1 // pred_fallthru
      _
    // Predicated region
    $region6: #{standard_net_forward.1} parent=1 // pred_check
      _
    $region7: #{standard_net_forward.1} parent=1 // pred_check_branch
      %22 = sbr.rel (0) target = $region9
    $region8: #{standard_net_forward.1} parent=1 // pred_region
      %s24 = ssub.s32 32, 32
      %25 = vsyncadd [#allocation3], %s24
      %s27 = sshll.u32 [#allocation2], 4
      %s28 = int_to_ptr.vmem [resolvable:$true] %s27
      %30 = dma.hbm_to_vmem [thread:$0]  %s1, 32, %s28, [#allocation3]
    $region9: #{standard_net_forward.1} parent=1 // pred_fallthru
      _
    // Predicated region
    $region10: #{standard_net_forward.1} parent=1 // pred_check
      _
    $region11: #{standard_net_forward.1} parent=1 // pred_check_branch
      %32 = sbr.rel (0) target = $region13
    $region12: #{standard_net_forward.1} parent=1 // pred_region
      %s34 = ssub.s32 32, 32
      %35 = vsyncadd [#allocation5], %s34
      %s37 = sshll.u32 [#allocation4], 4
      %s38 = int_to_ptr.vmem [resolvable:$true] %s37
      %40 = dma.hbm_to_vmem [thread:$0]  %s2, 32, %s38, [#allocation5]
    $region13: #{standard_net_forward.1} parent=1 // pred_fallthru
      _
    // Predicated region
    $region14: #{standard_net_forward.1} parent=1 // pred_check
      _
    $region15: #{standard_net_forward.1} parent=1 // pred_check_branch
      %42 = sbr.rel (0) target = $region17
    $region16: #{standard_net_forward.1} parent=1 // pred_region
      _
    $region17: #{standard_net_forward.1} parent=1 // pred_fallthru
      _
    // Predicated region
    $region18: #{standard_net_forward.1} parent=1 // pred_check
      _
    $region19: #{standard_net_forward.1} parent=1 // pred_check_branch
      %44 = sbr.rel (0) target = $region21
    $region20: #{standard_net_forward.1} parent=1 // pred_region
      %s46 = ssub.s32 16, 16
      %47 = vsyncadd [#allocation5], %s46
      %s49 = sshll.u32 [#allocation6], 4
      %s50 = int_to_ptr.vmem [resolvable:$true] %s49
      %52 = dma.hbm_to_vmem [thread:$0]  %s4, 16, %s50, [#allocation5]
    $region21: #{standard_net_forward.1} parent=1 // pred_fallthru
      _
    // Predicated region
    $region22: #{standard_net_forward.1} parent=1 // pred_check
      _
    $region23: #{standard_net_forward.1} parent=1 // pred_check_branch
      %54 = sbr.rel (0) target = $region25
    $region24: #{standard_net_forward.1} parent=1 // pred_region
      _
    $region25: #{standard_net_forward.1} parent=1 // pred_fallthru
      _
    // Predicated region
    $region26: #{standard_net_forward.1} parent=1 // pred_check
      _
    $region27: #{standard_net_forward.1} parent=1 // pred_check_branch
      %56 = sbr.rel (0) target = $region29
    $region28: #{standard_net_forward.1} parent=1 // pred_region
      %s58 = ssub.s32 16, 16
      %59 = vsyncadd [#allocation8], %s58
      %s61 = sshll.u32 [#allocation7], 4
      %s62 = int_to_ptr.vmem [resolvable:$true] %s61
      %64 = dma.hbm_to_vmem [thread:$0]  %s6, 16, %s62, [#allocation8]
    $region29: #{standard_net_forward.1} parent=1 // pred_fallthru
      _
    // Predicated region
    $region30: #{standard_net_forward.1} parent=1 // pred_check
      _
    $region31: #{standard_net_forward.1} parent=1 // pred_check_branch
      %66 = sbr.rel (0) target = $region33
    $region32: #{standard_net_forward.1} parent=1 // pred_region
      %s68 = ssub.s32 384, 384
      %69 = vsyncadd [#allocation8], %s68
      %s70 = sshll.u32 [#allocation9], 4
      %s71 = int_to_ptr.vmem [resolvable:$true] %s70
      %76 = dma.hbm_to_vmem [thread:$0]  %s7, 384, %s71, [#allocation8], 128, 128, 8
    $region33: #{standard_net_forward.1} parent=1 // pred_fallthru
      _
    // Predicated region
    $region34: #{standard_net_forward.1} parent=1 // pred_check
      _
    $region35: #{standard_net_forward.1} parent=1 // pred_check_branch
      %78 = sbr.rel (0) target = $region37
    $region36: #{standard_net_forward.1} parent=1 // pred_region
      _
    $region37: #{standard_net_forward.1} parent=1 // pred_fallthru
      _
    // Predicated region
    $region38: #{standard_net_forward.1} parent=1 // pred_check
      _
    $region39: #{standard_net_forward.1} parent=1 // pred_check_branch
      %80 = sbr.rel (0) target = $region41
    $region40: #{standard_net_forward.1} parent=1 // pred_region
      _
    $region41: #{standard_net_forward.1} parent=1 // pred_fallthru
      _
    // Predicated region
    $region42: #{standard_net_forward.1} parent=1 // pred_check
      _
    $region43: #{standard_net_forward.1} parent=1 // pred_check_branch
      %82 = sbr.rel (0) target = $region45
    $region44: #{standard_net_forward.1} parent=1 // pred_region
      _
    $region45: #{standard_net_forward.1} parent=1 // pred_fallthru
      _
    // Predicated region
    $region46: #{standard_net_forward.1} parent=1 // pred_check
      _
    $region47: #{standard_net_forward.1} parent=1 // pred_check_branch
      %84 = sbr.rel (0) target = $region49
    $region48: #{standard_net_forward.1} parent=1 // pred_region
      %85 = dma.done [#allocation3], 32
    $region49: #{standard_net_forward.1} parent=1 // pred_fallthru
      _
    // Predicated region
    $region50: #{standard_net_forward.1} parent=1 // pred_check
      _
    $region51: #{standard_net_forward.1} parent=1 // pred_check_branch
      %87 = sbr.rel (0) target = $region53
    $region52: #{standard_net_forward.1} parent=1 // pred_region
      %88 = dma.done [#allocation5], 32
    $region53: #{standard_net_forward.1} parent=1 // pred_fallthru
      _
    // Predicated region
    $region54: #{standard_net_forward.1} parent=1 // pred_check
      _
    $region55: #{standard_net_forward.1} parent=1 // pred_check_branch
      %90 = sbr.rel (0) target = $region57
    $region56: #{standard_net_forward.1} parent=1 // pred_region
      %91 = dma.done [#allocation5], 16
    $region57: #{standard_net_forward.1} parent=1 // pred_fallthru
      _
    // Predicated region
    $region58: #{standard_net_forward.1} parent=1 // pred_check
      _
    $region59: #{standard_net_forward.1} parent=1 // pred_check_branch
      %93 = sbr.rel (0) target = $region61
    $region60: #{standard_net_forward.1} parent=1 // pred_region
      %94 = dma.done [#allocation8], 16
    $region61: #{standard_net_forward.1} parent=1 // pred_fallthru
      _
    // Predicated region
    $region62: #{standard_net_forward.1} parent=1 // pred_check
      _
    $region63: #{standard_net_forward.1} parent=1 // pred_check_branch
      %96 = sbr.rel (0) target = $region65
    $region64: #{standard_net_forward.1} parent=1 // pred_region
      %97 = dma.done [#allocation8], 384
    $region65: #{standard_net_forward.1} parent=1 // pred_fallthru
      _
    %v98 = vld [vmem:[%s0] sm:$0x3]
    %v99 = vld [vmem:[#allocation2] sm:$0x3]
    %v100 = vld [vmem:[#allocation4] sm:$0x3]
    %v101 = vld [vmem:[%s3] sm:$0xff]
    %v102 = vld [vmem:[%s3 + $0x8] sm:$0xff]
    %v103 = vld [vmem:[%s3 + $0x10] sm:$0xff]
    %v104 = vld [vmem:[%s3 + $0x18] sm:$0xff]
    %v105 = vld [vmem:[%s3 + $0x20] sm:$0xff]
    %v106 = vld [vmem:[%s3 + $0x28] sm:$0xff]
    %v107 = vld [vmem:[%s3 + $0x30] sm:$0xff]
    %v108 = vld [vmem:[%s3 + $0x38] sm:$0xff]
    %v109 = vld [vmem:[#allocation6] sm:$0x1]
    %v111 = vlaneseq
    %v112 = vshrl.u32 %v111, 7
    %v113 = vsub.s32 0, %v112
    %v114 = vrot.slane %v109, %v113
    %vm116 = vcmask 523264
    %v118 = vsel %vm116, %v98, 0
    %120 = vmatprep.subr.mxu0 0.0
    %121 = vmatpush1.msra.mxu0 %v101
    %122 = vmatprep.subr.mxu0 0.0
    %123 = vmatpush1.msra.mxu0 %v102
    %124 = vmatprep.subr.mxu0 0.0
    %125 = vmatpush1.msra.mxu0 %v103
    %126 = vmatprep.subr.mxu0 0.0
    %127 = vmatpush1.msra.mxu0 %v104
    %128 = vmatprep.subr.mxu0 0.0
    %129 = vmatpush1.msra.mxu0 %v105
    %130 = vmatprep.subr.mxu0 0.0
    %131 = vmatpush1.msra.mxu0 %v106
    %132 = vmatprep.subr.mxu0 0.0
    %133 = vmatpush1.msra.mxu0 %v107
    %134 = vmatprep.subr.mxu0 0.0
    %135 = vmatpush1.msra.mxu0 %v108
    %136 = vmatprep.subr.mxu0 0.0
    %137 = vmatpush1.msra.mxu0 0.0
    %138 = vmatprep.subr.mxu0 0.0
    %139 = vmatpush1.msra.mxu0 0.0
    %140 = vmatprep.subr.mxu0 0.0
    %141 = vmatpush1.msra.mxu0 0.0
    %142 = vmatprep.subr.mxu0 0.0
    %143 = vmatpush1.msra.mxu0 0.0
    %144 = vmatprep.subr.mxu0 0.0
    %145 = vmatpush1.msra.mxu0 0.0
    %146 = vmatprep.subr.mxu0 0.0
    %147 = vmatpush1.msra.mxu0 0.0
    %148 = vmatprep.subr.mxu0 0.0
    %149 = vmatpush1.msra.mxu0 0.0
    %150 = vmatprep.subr.mxu0 0.0
    %151 = vmatpush1.msra.mxu0 0.0
    %152 = vmatprep.subr.mxu0 0.0
    %153 = vmatpush1.msra.mxu0 0.0
    %154 = vmatprep.subr.mxu0 0.0
    %155 = vmatpush1.msra.mxu0 0.0
    %156 = vmatprep.subr.mxu0 0.0
    %157 = vmatpush1.msra.mxu0 0.0
    %158 = vmatprep.subr.mxu0 0.0
    %159 = vmatpush1.msra.mxu0 0.0
    %160 = vmatprep.subr.mxu0 0.0
    %161 = vmatpush1.msra.mxu0 0.0
    %162 = vmatprep.subr.mxu0 0.0
    %163 = vmatpush1.msra.mxu0 0.0
    %164 = vmatprep.subr.mxu0 0.0
    %165 = vmatpush1.msra.mxu0 0.0
    %166 = vmatprep.subr.mxu0 0.0
    %167 = vmatpush1.msra.mxu0 0.0
    %168 = vmatprep.subr.mxu0 0.0
    %169 = vmatpush1.msra.mxu0 0.0
    %170 = vmatprep.subr.mxu0 0.0
    %171 = vmatpush1.msra.mxu0 0.0
    %172 = vmatprep.subr.mxu0 0.0
    %173 = vmatpush1.msra.mxu0 0.0
    %174 = vmatprep.subr.mxu0 0.0
    %175 = vmatpush1.msra.mxu0 0.0
    %176 = vmatprep.subr.mxu0 0.0
    %177 = vmatpush1.msra.mxu0 0.0
    %178 = vmatprep.subr.mxu0 0.0
    %179 = vmatpush1.msra.mxu0 0.0
    %180 = vmatprep.subr.mxu0 0.0
    %181 = vmatpush1.msra.mxu0 0.0
    %182 = vmatprep.subr.mxu0 0.0
    %183 = vmatpush1.msra.mxu0 0.0
    %184 = vmatprep.mubr.f32.mxu0 0.0
    %185 = vmatmul.mubr.f32.gmra.mrb[0].mxu0 %v118
    %v186 = vpop.f32.mrb[0].mxu0
    %v187 = vadd.f32 %v114, %v186
    %v188 = vpop.f32.mrb[0].mxu0
    %189 = vdwg.mxu0
    %v190 = vmax.f32 %v187, 0.0
    %v191 = vld [vmem:[%s5] sm:$0xff]
    %v192 = vld [vmem:[%s5 + $0x8] sm:$0xff]
    %v193 = vld [vmem:[%s5 + $0x10] sm:$0xff]
    %v194 = vld [vmem:[%s5 + $0x18] sm:$0xff]
    %v195 = vld [vmem:[%s5 + $0x20] sm:$0xff]
    %v196 = vld [vmem:[%s5 + $0x28] sm:$0xff]
    %v197 = vld [vmem:[%s5 + $0x30] sm:$0xff]
    %v198 = vld [vmem:[%s5 + $0x38] sm:$0xff]
    %v199 = vld [vmem:[#allocation7] sm:$0x1]
    %v201 = vlaneseq
    %v202 = vshrl.u32 %v201, 7
    %v203 = vsub.s32 0, %v202
    %v204 = vrot.slane %v199, %v203
    %v207 = vsel %vm116, %v190, 0
    %209 = vmatprep.subr.mxu0 0.0
    %210 = vmatpush1.msra.mxu0 %v191
    %211 = vmatprep.subr.mxu0 0.0
    %212 = vmatpush1.msra.mxu0 %v192
    %213 = vmatprep.subr.mxu0 0.0
    %214 = vmatpush1.msra.mxu0 %v193
    %215 = vmatprep.subr.mxu0 0.0
    %216 = vmatpush1.msra.mxu0 %v194
    %217 = vmatprep.subr.mxu0 0.0
    %218 = vmatpush1.msra.mxu0 %v195
    %219 = vmatprep.subr.mxu0 0.0
    %220 = vmatpush1.msra.mxu0 %v196
    %221 = vmatprep.subr.mxu0 0.0
    %222 = vmatpush1.msra.mxu0 %v197
    %223 = vmatprep.subr.mxu0 0.0
    %224 = vmatpush1.msra.mxu0 %v198
    %225 = vmatprep.subr.mxu0 0.0
    %226 = vmatpush1.msra.mxu0 0.0
    %227 = vmatprep.subr.mxu0 0.0
    %228 = vmatpush1.msra.mxu0 0.0
    %229 = vmatprep.subr.mxu0 0.0
    %230 = vmatpush1.msra.mxu0 0.0
    %231 = vmatprep.subr.mxu0 0.0
    %232 = vmatpush1.msra.mxu0 0.0
    %233 = vmatprep.subr.mxu0 0.0
    %234 = vmatpush1.msra.mxu0 0.0
    %235 = vmatprep.subr.mxu0 0.0
    %236 = vmatpush1.msra.mxu0 0.0
    %237 = vmatprep.subr.mxu0 0.0
    %238 = vmatpush1.msra.mxu0 0.0
    %239 = vmatprep.subr.mxu0 0.0
    %240 = vmatpush1.msra.mxu0 0.0
    %241 = vmatprep.subr.mxu0 0.0
    %242 = vmatpush1.msra.mxu0 0.0
    %243 = vmatprep.subr.mxu0 0.0
    %244 = vmatpush1.msra.mxu0 0.0
    %245 = vmatprep.subr.mxu0 0.0
    %246 = vmatpush1.msra.mxu0 0.0
    %247 = vmatprep.subr.mxu0 0.0
    %248 = vmatpush1.msra.mxu0 0.0
    %249 = vmatprep.subr.mxu0 0.0
    %250 = vmatpush1.msra.mxu0 0.0
    %251 = vmatprep.subr.mxu0 0.0
    %252 = vmatpush1.msra.mxu0 0.0
    %253 = vmatprep.subr.mxu0 0.0
    %254 = vmatpush1.msra.mxu0 0.0
    %255 = vmatprep.subr.mxu0 0.0
    %256 = vmatpush1.msra.mxu0 0.0
    %257 = vmatprep.subr.mxu0 0.0
    %258 = vmatpush1.msra.mxu0 0.0
    %259 = vmatprep.subr.mxu0 0.0
    %260 = vmatpush1.msra.mxu0 0.0
    %261 = vmatprep.subr.mxu0 0.0
    %262 = vmatpush1.msra.mxu0 0.0
    %263 = vmatprep.subr.mxu0 0.0
    %264 = vmatpush1.msra.mxu0 0.0
    %265 = vmatprep.subr.mxu0 0.0
    %266 = vmatpush1.msra.mxu0 0.0
    %267 = vmatprep.subr.mxu0 0.0
    %268 = vmatpush1.msra.mxu0 0.0
    %269 = vmatprep.subr.mxu0 0.0
    %270 = vmatpush1.msra.mxu0 0.0
    %271 = vmatprep.subr.mxu0 0.0
    %272 = vmatpush1.msra.mxu0 0.0
    %273 = vmatprep.mubr.f32.mxu0 0.0
    %274 = vmatmul.mubr.f32.gmra.mrb[0].mxu0 %v207
    %v275 = vpop.f32.mrb[0].mxu0
    %v276 = vadd.f32 %v204, %v275
    %v277 = vpop.f32.mrb[0].mxu0
    %278 = vdwg.mxu0
    %v279 = vmul.f32 %v276, %v276
    %vm280 = vcmask 254976
    %v281 = vsel %vm280, %v279, 0.0
    %282 = vadd.xlane.f32.xlu0 %v281
    %v283 = vpop.xlane.xlu0 %282
    %v284 = vrcp.pop 32.0
    %v285 = vmul.f32 %v283, %v284
    %v286 = vadd.f32 %v285, 1e-08
    %v287 = vrsqrt.pop %v286
    %v288 = vmul.f32 %v276, %v287
    %v289 = vmul.f32 %v100, 0.1
    %291 = vset.pattern.permute.xlu0 0
    %292 = vperm.xlu0 %291, %v99
    %v293 = vpop.permute.xlu0 %292
    %v295 = vmul.f32 %v293, %v288
    %v296 = vadd.f32 %v289, %v295
    %297 = vset.pattern.permute.xlu0 1
    %298 = vperm.xlu0 %297, %v99
    %v299 = vpop.permute.xlu0 %298
    %v301 = vmul.f32 %v299, %v288
    %303 = vrot.lane.b32.xlu0 %v301, 112
    %v304 = vpop.permute.xlu0 %303
    %v306 = vadd.f32 %v296, %v304
    %307 = vrot.lane.b32.xlu0 %v99, 16
    %v308 = vpop.permute.xlu0 %307
    %vm310 = vcmask 130048
    %v311 = vsel %vm310, %v306, %v308
    %v312 = vld [vmem:[#allocation9] sm:$0xff]
    %v313 = vld [vmem:[#allocation9 + $0x8] sm:$0xff]
    %v314 = vld [vmem:[#allocation9 + $0x10] sm:$0x3]
    %v315 = vld [vmem:[%s8] sm:$0x1]
    %v317 = vlaneseq
    %v318 = vshrl.u32 %v317, 7
    %v319 = vsub.s32 0, %v318
    %v320 = vrot.slane %v315, %v319
    %vm322 = vcmask 146432
    %v324 = vsel %vm322, %v311, 0
    %vm326 = vcmask 1041408
    %v328 = vsel %vm326, %v314, 0
    %330 = vmatprep.subr.mxu0 0.0
    %331 = vmatpush1.msra.mxu0 %v312
    %332 = vmatprep.subr.mxu0 0.0
    %333 = vmatpush1.msra.mxu0 %v313
    %334 = vmatprep.subr.mxu0 0.0
    %335 = vmatpush1.msra.mxu0 %v328
    %336 = vmatprep.subr.mxu0 0.0
    %337 = vmatpush1.msra.mxu0 0.0
    %338 = vmatprep.subr.mxu0 0.0
    %339 = vmatpush1.msra.mxu0 0.0
    %340 = vmatprep.subr.mxu0 0.0
    %341 = vmatpush1.msra.mxu0 0.0
    %342 = vmatprep.subr.mxu0 0.0
    %343 = vmatpush1.msra.mxu0 0.0
    %344 = vmatprep.subr.mxu0 0.0
    %345 = vmatpush1.msra.mxu0 0.0
    %346 = vmatprep.subr.mxu0 0.0
    %347 = vmatpush1.msra.mxu0 0.0
    %348 = vmatprep.subr.mxu0 0.0
    %349 = vmatpush1.msra.mxu0 0.0
    %350 = vmatprep.subr.mxu0 0.0
    %351 = vmatpush1.msra.mxu0 0.0
    %352 = vmatprep.subr.mxu0 0.0
    %353 = vmatpush1.msra.mxu0 0.0
    %354 = vmatprep.subr.mxu0 0.0
    %355 = vmatpush1.msra.mxu0 0.0
    %356 = vmatprep.subr.mxu0 0.0
    %357 = vmatpush1.msra.mxu0 0.0
    %358 = vmatprep.subr.mxu0 0.0
    %359 = vmatpush1.msra.mxu0 0.0
    %360 = vmatprep.subr.mxu0 0.0
    %361 = vmatpush1.msra.mxu0 0.0
    %362 = vmatprep.subr.mxu0 0.0
    %363 = vmatpush1.msra.mxu0 0.0
    %364 = vmatprep.subr.mxu0 0.0
    %365 = vmatpush1.msra.mxu0 0.0
    %366 = vmatprep.subr.mxu0 0.0
    %367 = vmatpush1.msra.mxu0 0.0
    %368 = vmatprep.subr.mxu0 0.0
    %369 = vmatpush1.msra.mxu0 0.0
    %370 = vmatprep.subr.mxu0 0.0
    %371 = vmatpush1.msra.mxu0 0.0
    %372 = vmatprep.subr.mxu0 0.0
    %373 = vmatpush1.msra.mxu0 0.0
    %374 = vmatprep.subr.mxu0 0.0
    %375 = vmatpush1.msra.mxu0 0.0
    %376 = vmatprep.subr.mxu0 0.0
    %377 = vmatpush1.msra.mxu0 0.0
    %378 = vmatprep.subr.mxu0 0.0
    %379 = vmatpush1.msra.mxu0 0.0
    %380 = vmatprep.subr.mxu0 0.0
    %381 = vmatpush1.msra.mxu0 0.0
    %382 = vmatprep.subr.mxu0 0.0
    %383 = vmatpush1.msra.mxu0 0.0
    %384 = vmatprep.subr.mxu0 0.0
    %385 = vmatpush1.msra.mxu0 0.0
    %386 = vmatprep.subr.mxu0 0.0
    %387 = vmatpush1.msra.mxu0 0.0
    %388 = vmatprep.subr.mxu0 0.0
    %389 = vmatpush1.msra.mxu0 0.0
    %390 = vmatprep.subr.mxu0 0.0
    %391 = vmatpush1.msra.mxu0 0.0
    %392 = vmatprep.subr.mxu0 0.0
    %393 = vmatpush1.msra.mxu0 0.0
    %394 = vmatprep.mubr.f32.mxu0 0.0
    %395 = vmatmul.mubr.f32.gmra.mrb[0].mxu0 %v324
    %v396 = vpop.f32.mrb[0].mxu0
    %v397 = vadd.f32 %v320, %v396
    %v398 = vpop.f32.mrb[0].mxu0
    %399 = vdwg.mxu0
    %v400 = vmax.f32 %v397, 0.0
    %v401 = vld [vmem:[%s9] sm:$0xff]
    %v402 = vld [vmem:[%s9 + $0x8] sm:$0xff]
    %v403 = vld [vmem:[%s9 + $0x10] sm:$0xff]
    %v404 = vld [vmem:[%s9 + $0x18] sm:$0xff]
    %v405 = vld [vmem:[%s9 + $0x20] sm:$0xff]
    %v406 = vld [vmem:[%s9 + $0x28] sm:$0xff]
    %v407 = vld [vmem:[%s9 + $0x30] sm:$0xff]
    %v408 = vld [vmem:[%s9 + $0x38] sm:$0xff]
    %v409 = vld [vmem:[%s10] sm:$0x1]
    %v411 = vlaneseq
    %v412 = vshrl.u32 %v411, 7
    %v413 = vsub.s32 0, %v412
    %v414 = vrot.slane %v409, %v413
    %v417 = vsel %vm116, %v400, 0
    %419 = vmatprep.subr.mxu0 0.0
    %420 = vmatpush1.msra.mxu0 %v401
    %421 = vmatprep.subr.mxu0 0.0
    %422 = vmatpush1.msra.mxu0 %v402
    %423 = vmatprep.subr.mxu0 0.0
    %424 = vmatpush1.msra.mxu0 %v403
    %425 = vmatprep.subr.mxu0 0.0
    %426 = vmatpush1.msra.mxu0 %v404
    %427 = vmatprep.subr.mxu0 0.0
    %428 = vmatpush1.msra.mxu0 %v405
    %429 = vmatprep.subr.mxu0 0.0
    %430 = vmatpush1.msra.mxu0 %v406
    %431 = vmatprep.subr.mxu0 0.0
    %432 = vmatpush1.msra.mxu0 %v407
    %433 = vmatprep.subr.mxu0 0.0
    %434 = vmatpush1.msra.mxu0 %v408
    %435 = vmatprep.subr.mxu0 0.0
    %436 = vmatpush1.msra.mxu0 0.0
    %437 = vmatprep.subr.mxu0 0.0
    %438 = vmatpush1.msra.mxu0 0.0
    %439 = vmatprep.subr.mxu0 0.0
    %440 = vmatpush1.msra.mxu0 0.0
    %441 = vmatprep.subr.mxu0 0.0
    %442 = vmatpush1.msra.mxu0 0.0
    %443 = vmatprep.subr.mxu0 0.0
    %444 = vmatpush1.msra.mxu0 0.0
    %445 = vmatprep.subr.mxu0 0.0
    %446 = vmatpush1.msra.mxu0 0.0
    %447 = vmatprep.subr.mxu0 0.0
    %448 = vmatpush1.msra.mxu0 0.0
    %449 = vmatprep.subr.mxu0 0.0
    %450 = vmatpush1.msra.mxu0 0.0
    %451 = vmatprep.subr.mxu0 0.0
    %452 = vmatpush1.msra.mxu0 0.0
    %453 = vmatprep.subr.mxu0 0.0
    %454 = vmatpush1.msra.mxu0 0.0
    %455 = vmatprep.subr.mxu0 0.0
    %456 = vmatpush1.msra.mxu0 0.0
    %457 = vmatprep.subr.mxu0 0.0
    %458 = vmatpush1.msra.mxu0 0.0
    %459 = vmatprep.subr.mxu0 0.0
    %460 = vmatpush1.msra.mxu0 0.0
    %461 = vmatprep.subr.mxu0 0.0
    %462 = vmatpush1.msra.mxu0 0.0
    %463 = vmatprep.subr.mxu0 0.0
    %464 = vmatpush1.msra.mxu0 0.0
    %465 = vmatprep.subr.mxu0 0.0
    %466 = vmatpush1.msra.mxu0 0.0
    %467 = vmatprep.subr.mxu0 0.0
    %468 = vmatpush1.msra.mxu0 0.0
    %469 = vmatprep.subr.mxu0 0.0
    %470 = vmatpush1.msra.mxu0 0.0
    %471 = vmatprep.subr.mxu0 0.0
    %472 = vmatpush1.msra.mxu0 0.0
    %473 = vmatprep.subr.mxu0 0.0
    %474 = vmatpush1.msra.mxu0 0.0
    %475 = vmatprep.subr.mxu0 0.0
    %476 = vmatpush1.msra.mxu0 0.0
    %477 = vmatprep.subr.mxu0 0.0
    %478 = vmatpush1.msra.mxu0 0.0
    %479 = vmatprep.subr.mxu0 0.0
    %480 = vmatpush1.msra.mxu0 0.0
    %481 = vmatprep.subr.mxu0 0.0
    %482 = vmatpush1.msra.mxu0 0.0
    %483 = vmatprep.mubr.f32.mxu0 0.0
    %484 = vmatmul.mubr.f32.gmra.mrb[0].mxu0 %v417
    %v485 = vpop.f32.mrb[0].mxu0
    %v486 = vadd.f32 %v414, %v485
    %v487 = vpop.f32.mrb[0].mxu0
    %488 = vdwg.mxu0
    %vm489 = vcmask 517120
    %490 = vst.msk [vmem:[%s11] sm:$0x3] %vm489, %v486
    // Predicated region
    $region66: #{standard_net_forward.1} parent=1 // pred_check
      _
    $region67: #{standard_net_forward.1} parent=1 // pred_check_branch
      %492 = sbr.rel (0) target = $region69
    $region68: #{standard_net_forward.1} parent=1 // pred_region
      _
    $region69: #{standard_net_forward.1} parent=1 // pred_fallthru
      _
    // Predicated region
    $region70: #{standard_net_forward.1} parent=1 // pred_check
      _
    $region71: #{standard_net_forward.1} parent=1 // pred_check_branch
      %494 = sbr.rel (0) target = $region73
    $region72: #{standard_net_forward.1} parent=1 // pred_region
      _
    $region73: #{standard_net_forward.1} parent=1 // pred_fallthru
      _
    %495 = vsyncpa [#allocation3], 1
    %496 = vsyncpa [#allocation5], 1
    %497 = vsyncpa [#allocation8], 1

</llo_original>
